<compile_context>
chip_gen: v7x
topology: tpu7x:2x2x1
jax: 0.10.0
libtpu: 0.0.40
codegen_flags: <defaults>
</compile_context>

<pallas_src>
import jax
import jax.numpy as jnp
from jax.experimental import pallas as pl
from jax.experimental.pallas import tpu as pltpu


def _mlp_kernel(obs_ref, unc_ref, w1_ref, b1_ref, w2_ref, b2_ref,
                w3_ref, b3_ref, o_ref):
    # Fused concat on the lane dim: [obs | unc] -> (tile, 2D).  Cheap XLU op.
    x = jnp.concatenate([obs_ref[...], unc_ref[...]], axis=-1)

    # Three matmuls, all accumulating in f32 on the MXU; bias + ReLU in f32,
    # then cast back to the matmul dtype (no-op on the f32 path).
    h = jnp.dot(x, w1_ref[...], preferred_element_type=jnp.float32) + b1_ref[...]
    h = jnp.maximum(h, 0.0).astype(w2_ref.dtype)
    h = jnp.dot(h, w2_ref[...], preferred_element_type=jnp.float32) + b2_ref[...]
    h = jnp.maximum(h, 0.0).astype(w3_ref.dtype)
    o_ref[...] = (jnp.dot(h, w3_ref[...], preferred_element_type=jnp.float32)
                  + b3_ref[...]).astype(o_ref.dtype)


def _round_up(x, m):
    return ((x + m - 1) // m) * m


# Lane-padded VMEM accounting: the (tile, 5) input blocks pad to 128 lanes, so at
# tile=2048 the double-buffered inputs + output + h1/h2/x temporaries come to
# ~6 MiB (bf16 matmuls) / ~9 MiB (f32) — safely under v5e's 16 MiB scoped-VMEM
# default, v6e's 32 MiB default, and v7x's 64 MiB physical VMEM.
_MAX_TILE_B = 2048
# Never emit grid steps smaller than this: on single-TC v5e/v6e the grid is a
# sequential loop (+~0.35 us/step), and on 2-TC v7x megacore only pays off once
# each core has real work per step.
_MIN_SPLIT_ROWS = 512


def _choose_tile(B, tile_b):
    cap = min(_round_up(max(tile_b, 8), 8), _MAX_TILE_B)
    if B <= 2 * _MIN_SPLIT_ROWS:
        # Small/medium batch: one block equal to the full batch dim.  No padding,
        # no edge masking, no pointless grid split.
        return B, 1
    if B <= cap:
        # Big enough that two steps still have >= _MIN_SPLIT_ROWS rows each:
        # split so ("parallel",) can shard over both v7x TensorCores.  Harmless
        # (two large sequential steps) on 1-TC v5e/v6e.
        tile = _round_up(pl.cdiv(B, 2), 8)
        return tile, pl.cdiv(B, tile)
    # Large batch: big lane-dense tiles; ragged tail handled by Pallas's masked
    # edge block (no host-side jnp.pad HBM round trip).
    return cap, pl.cdiv(B, cap)


def recognition_forward(observed_data, uncertainties, params, *,
                        tile_b=1024,
                        matmul_dtype=jnp.bfloat16,
                        out_dtype=jnp.float32):
    """Pallas implementation of RecognitionNetwork.forward (conditioning net).

    matmul_dtype=jnp.bfloat16 runs the MXU in its native precision with f32
    accumulation (recommended); pass jnp.float32 for an exact-semantics path.
    out_dtype=jnp.bfloat16 additionally halves the dominant output writeback if
    the downstream flow accepts it.
    """
    w1, b1, w2, b2, w3, b3 = params
    obs = observed_data.astype(matmul_dtype)
    unc = uncertainties.astype(matmul_dtype)
    w1 = w1.astype(matmul_dtype)
    w2 = w2.astype(matmul_dtype)
    w3 = w3.astype(matmul_dtype)
    b1 = b1.astype(jnp.float32)
    b2 = b2.astype(jnp.float32)
    b3 = b3.astype(jnp.float32)

    B, D = obs.shape
    H = w1.shape[1]
    assert w1.shape[0] == 2 * D

    tile, steps = _choose_tile(B, tile_b)
    grid = (steps,)

    itm = jnp.dtype(matmul_dtype).itemsize
    cost = pl.CostEstimate(
        flops=2 * B * (2 * D * H + 2 * H * H),
        transcendentals=0,
        bytes_accessed=(2 * B * D * itm                      # obs + unc
                        + (2 * D * H + 2 * H * H) * itm      # weights
                        + 3 * H * 4                          # biases (f32)
                        + B * H * jnp.dtype(out_dtype).itemsize),
    )

    # Weight/bias blocks have constant index maps, so Pallas keeps them resident
    # in VMEM across grid steps (no per-step re-fetch).
    return pl.pallas_call(
        _mlp_kernel,
        out_shape=jax.ShapeDtypeStruct((B, H), out_dtype),
        grid_spec=pltpu.PrefetchScalarGridSpec(
            num_scalar_prefetch=0,
            grid=grid,
            in_specs=[
                pl.BlockSpec((tile, D), lambda i: (i, 0)),    # observed_data tile
                pl.BlockSpec((tile, D), lambda i: (i, 0)),    # uncertainties tile
                pl.BlockSpec((2 * D, H), lambda i: (0, 0)),   # W1 (resident)
                pl.BlockSpec((1, H), lambda i: (0, 0)),       # b1
                pl.BlockSpec((H, H), lambda i: (0, 0)),       # W2 (resident)
                pl.BlockSpec((1, H), lambda i: (0, 0)),       # b2
                pl.BlockSpec((H, H), lambda i: (0, 0)),       # W3 (resident)
                pl.BlockSpec((1, H), lambda i: (0, 0)),       # b3
            ],
            out_specs=pl.BlockSpec((tile, H), lambda i: (i, 0)),
        ),
        compiler_params=pltpu.CompilerParams(
            dimension_semantics=("parallel",)),
        cost_estimate=cost,
    )(obs, unc, w1, b1, w2, b2, w3, b3)


def init_params(key, input_dim=5, hidden_dim=128):
    """PyTorch-Linear-style init: U(-1/sqrt(fan_in), +1/sqrt(fan_in)).
    Weights returned as (in_features, out_features)."""
    def linear(k, fan_in, fan_out):
        kw, kb = jax.random.split(k)
        bound = 1.0 / jnp.sqrt(fan_in)
        w = jax.random.uniform(kw, (fan_in, fan_out), jnp.float32, -bound, bound)
        b = jax.random.uniform(kb, (1, fan_out), jnp.float32, -bound, bound)
        return w, b

    k1, k2, k3 = jax.random.split(key, 3)
    w1, b1 = linear(k1, input_dim * 2, hidden_dim)
    w2, b2 = linear(k2, hidden_dim, hidden_dim)
    w3, b3 = linear(k3, hidden_dim, hidden_dim)
    return (w1, b1, w2, b2, w3, b3)


def reference_forward(observed_data, uncertainties, params):
    """Exact f32 pure-JAX reference."""
    w1, b1, w2, b2, w3, b3 = params
    x = jnp.concatenate([observed_data, uncertainties], axis=1)
    h = jax.nn.relu(x @ w1 + b1)
    h = jax.nn.relu(h @ w2 + b2)
    return h @ w3 + b3


def reference_forward_cast(observed_data, uncertainties, params, dtype):
    """Reference that mirrors the kernel's mixed-precision casts (bf16 matmuls,
    f32 accumulation / bias / ReLU), for tight comparison of the bf16 path."""
    w1, b1, w2, b2, w3, b3 = params
    x = jnp.concatenate([observed_data, uncertainties], axis=1).astype(dtype)
    h = jnp.dot(x, w1.astype(dtype), preferred_element_type=jnp.float32) + b1
    h = jnp.maximum(h, 0.0).astype(dtype)
    h = jnp.dot(h, w2.astype(dtype), preferred_element_type=jnp.float32) + b2
    h = jnp.maximum(h, 0.0).astype(dtype)
    return jnp.dot(h, w3.astype(dtype), preferred_element_type=jnp.float32) + b3


# TODO(synk): sample()/log_prob() use an nflows IAF (rational-quadratic spline
# autoregressive transforms); only forward() (the conditioning net) is kernelized.

if __name__ == "__main__":
    input_dim = 5
    hidden_dim = 128

    key = jax.random.PRNGKey(0)
    params = init_params(jax.random.fold_in(key, 123),
                         input_dim=input_dim, hidden_dim=hidden_dim)

    # batch=8: aligned single-block grid.  batch=20: ragged batch (block equals
    # the full, non-multiple-of-8 batch dim — no padding, no slicing).
    for batch in (8, 20):
        ko, ku = jax.random.split(jax.random.fold_in(key, batch))
        observed_data = jax.random.normal(ko, (batch, input_dim), jnp.float32)
        uncertainties = jax.nn.softplus(
            jax.random.normal(ku, (batch, input_dim), jnp.float32))

        ref = reference_forward(observed_data, uncertainties, params)

        # Exact-semantics f32 path.
        out_f32 = recognition_forward(observed_data, uncertainties, params,
                                      matmul_dtype=jnp.float32)
        out_f32 = jax.block_until_ready(out_f32)
        assert out_f32.shape == (batch, hidden_dim)
        assert jnp.allclose(out_f32, ref, atol=1e-5, rtol=1e-5), \
            "f32 path mismatch vs. JAX reference"

        # Fast bf16-MXU path (f32 accumulation) — compared against a reference
        # with the same casts (tight) and the exact f32 reference (loose).
        out_bf = recognition_forward(observed_data, uncertainties, params)
        out_bf = jax.block_until_ready(out_bf)
        ref_bf = reference_forward_cast(observed_data, uncertainties, params,
                                        jnp.bfloat16)
        assert out_bf.shape == (batch, hidden_dim)
        assert jnp.allclose(out_bf, ref_bf, atol=1e-3, rtol=1e-3), \
            "bf16 path mismatch vs. cast-mirrored reference"
        assert jnp.allclose(out_bf, ref, atol=1.5e-1, rtol=5e-2), \
            "bf16 path too far from exact f32 reference"

    print("KERNEL_OK")
</pallas_src>

<mosaic_0001>
module attributes {stable_mosaic.version = 11 : i64} {
  func.func @_mlp_kernel(%arg0: i32, %arg1: memref<8x5xf32, #tpu.memory_space<vmem>>, %arg2: memref<8x5xf32, #tpu.memory_space<vmem>>, %arg3: memref<10x128xf32, #tpu.memory_space<vmem>>, %arg4: memref<1x128xf32, #tpu.memory_space<vmem>>, %arg5: memref<128x128xf32, #tpu.memory_space<vmem>>, %arg6: memref<1x128xf32, #tpu.memory_space<vmem>>, %arg7: memref<128x128xf32, #tpu.memory_space<vmem>>, %arg8: memref<1x128xf32, #tpu.memory_space<vmem>>, %arg9: memref<8x128xf32, #tpu.memory_space<vmem>>) attributes {dimension_semantics = [#tpu.dimension_semantics<parallel>], iteration_bounds = array<i64: 1>, scalar_prefetch = 0 : i64, scratch_operands = 0 : i64, tpu.core_type = #tpu.core_type<tc>, window_params = [{transform_indices = @transform_0, window_bounds = array<i64: 8, 5>}, {transform_indices = @transform_1, window_bounds = array<i64: 8, 5>}, {pipeline_mode = #tpu.pipeline_mode<synchronous>, transform_indices = @transform_2, window_bounds = array<i64: 10, 128>}, {pipeline_mode = #tpu.pipeline_mode<synchronous>, transform_indices = @transform_3, window_bounds = array<i64: 1, 128>}, {pipeline_mode = #tpu.pipeline_mode<synchronous>, transform_indices = @transform_4, window_bounds = array<i64: 128, 128>}, {pipeline_mode = #tpu.pipeline_mode<synchronous>, transform_indices = @transform_5, window_bounds = array<i64: 1, 128>}, {pipeline_mode = #tpu.pipeline_mode<synchronous>, transform_indices = @transform_6, window_bounds = array<i64: 128, 128>}, {pipeline_mode = #tpu.pipeline_mode<synchronous>, transform_indices = @transform_7, window_bounds = array<i64: 1, 128>}, {transform_indices = @transform_8, window_bounds = array<i64: 8, 128>}]} {
    %c0 = arith.constant 0 : index
    %c0_0 = arith.constant 0 : index
    %0 = vector.load %arg1[%c0, %c0_0] : memref<8x5xf32, #tpu.memory_space<vmem>>, vector<8x5xf32>
    %c0_1 = arith.constant 0 : index
    %c0_2 = arith.constant 0 : index
    %1 = vector.load %arg2[%c0_1, %c0_2] : memref<8x5xf32, #tpu.memory_space<vmem>>, vector<8x5xf32>
    %2 = tpu.concatenate %0, %1 in 1 : vector<8x5xf32>, vector<8x5xf32> -> vector<8x10xf32>
    %c0_3 = arith.constant 0 : index
    %c0_4 = arith.constant 0 : index
    %3 = vector.load %arg3[%c0_3, %c0_4] : memref<10x128xf32, #tpu.memory_space<vmem>>, vector<10x128xf32>
    %cst = arith.constant dense<0.000000e+00> : vector<8x128xf32>
    %4 = tpu.matmul %2, %3, %cst {dimension_numbers = #tpu.dot_dimension_numbers<[1], [0], [0], [1], [0, 0, 1, 1], [], []>} : vector<8x10xf32>, vector<10x128xf32>, vector<8x128xf32> -> vector<8x128xf32>
    %c0_5 = arith.constant 0 : index
    %c0_6 = arith.constant 0 : index
    %5 = vector.load %arg4[%c0_5, %c0_6] : memref<1x128xf32, #tpu.memory_space<vmem>>, vector<1x128xf32>
    %6 = vector.broadcast %5 : vector<1x128xf32> to vector<8x128xf32>
    %7 = arith.addf %4, %6 : vector<8x128xf32>
    %cst_7 = arith.constant 0.000000e+00 : f32
    %8 = vector.broadcast %cst_7 : f32 to vector<8x128xf32>
    %9 = arith.maximumf %7, %8 : vector<8x128xf32>
    %c0_8 = arith.constant 0 : index
    %c0_9 = arith.constant 0 : index
    %10 = vector.load %arg5[%c0_8, %c0_9] : memref<128x128xf32, #tpu.memory_space<vmem>>, vector<128x128xf32>
    %cst_10 = arith.constant dense<0.000000e+00> : vector<8x128xf32>
    %11 = tpu.matmul %9, %10, %cst_10 {dimension_numbers = #tpu.dot_dimension_numbers<[1], [0], [0], [1], [0, 0, 1, 1], [], []>} : vector<8x128xf32>, vector<128x128xf32>, vector<8x128xf32> -> vector<8x128xf32>
    %c0_11 = arith.constant 0 : index
    %c0_12 = arith.constant 0 : index
    %12 = vector.load %arg6[%c0_11, %c0_12] : memref<1x128xf32, #tpu.memory_space<vmem>>, vector<1x128xf32>
    %13 = vector.broadcast %12 : vector<1x128xf32> to vector<8x128xf32>
    %14 = arith.addf %11, %13 : vector<8x128xf32>
    %cst_13 = arith.constant 0.000000e+00 : f32
    %15 = vector.broadcast %cst_13 : f32 to vector<8x128xf32>
    %16 = arith.maximumf %14, %15 : vector<8x128xf32>
    %c0_14 = arith.constant 0 : index
    %c0_15 = arith.constant 0 : index
    %17 = vector.load %arg7[%c0_14, %c0_15] : memref<128x128xf32, #tpu.memory_space<vmem>>, vector<128x128xf32>
    %cst_16 = arith.constant dense<0.000000e+00> : vector<8x128xf32>
    %18 = tpu.matmul %16, %17, %cst_16 {dimension_numbers = #tpu.dot_dimension_numbers<[1], [0], [0], [1], [0, 0, 1, 1], [], []>} : vector<8x128xf32>, vector<128x128xf32>, vector<8x128xf32> -> vector<8x128xf32>
    %c0_17 = arith.constant 0 : index
    %c0_18 = arith.constant 0 : index
    %19 = vector.load %arg8[%c0_17, %c0_18] : memref<1x128xf32, #tpu.memory_space<vmem>>, vector<1x128xf32>
    %20 = vector.broadcast %19 : vector<1x128xf32> to vector<8x128xf32>
    %21 = arith.addf %18, %20 : vector<8x128xf32>
    %c0_19 = arith.constant 0 : index
    %c0_20 = arith.constant 0 : index
    %22 = vector.load %arg9[%c0_19, %c0_20] : memref<8x128xf32, #tpu.memory_space<vmem>>, vector<8x128xf32>
    tpu.vector_store %arg9[%c0_19, %c0_20], %21 {strides = array<i32>} : memref<8x128xf32, #tpu.memory_space<vmem>>, vector<8x128xf32>,
    return
  }
  func.func @transform_0(%arg0: i32) -> (i32, i32) {
    %c0_i32 = arith.constant 0 : i32
    %c0_i32_0 = arith.constant 0 : i32
    return %arg0, %c0_i32 : i32, i32
  }
  func.func @transform_1(%arg0: i32) -> (i32, i32) {
    %c0_i32 = arith.constant 0 : i32
    %c0_i32_0 = arith.constant 0 : i32
    return %arg0, %c0_i32 : i32, i32
  }
  func.func @transform_2(%arg0: i32) -> (i32, i32) {
    %c0_i32 = arith.constant 0 : i32
    %c0_i32_0 = arith.constant 0 : i32
    %c0_i32_1 = arith.constant 0 : i32
    return %c0_i32, %c0_i32_0 : i32, i32
  }
  func.func @transform_3(%arg0: i32) -> (i32, i32) {
    %c0_i32 = arith.constant 0 : i32
    %c0_i32_0 = arith.constant 0 : i32
    %c0_i32_1 = arith.constant 0 : i32
    return %c0_i32, %c0_i32_0 : i32, i32
  }
  func.func @transform_4(%arg0: i32) -> (i32, i32) {
    %c0_i32 = arith.constant 0 : i32
    %c0_i32_0 = arith.constant 0 : i32
    %c0_i32_1 = arith.constant 0 : i32
    return %c0_i32, %c0_i32_0 : i32, i32
  }
  func.func @transform_5(%arg0: i32) -> (i32, i32) {
    %c0_i32 = arith.constant 0 : i32
    %c0_i32_0 = arith.constant 0 : i32
    %c0_i32_1 = arith.constant 0 : i32
    return %c0_i32, %c0_i32_0 : i32, i32
  }
  func.func @transform_6(%arg0: i32) -> (i32, i32) {
    %c0_i32 = arith.constant 0 : i32
    %c0_i32_0 = arith.constant 0 : i32
    %c0_i32_1 = arith.constant 0 : i32
    return %c0_i32, %c0_i32_0 : i32, i32
  }
  func.func @transform_7(%arg0: i32) -> (i32, i32) {
    %c0_i32 = arith.constant 0 : i32
    %c0_i32_0 = arith.constant 0 : i32
    %c0_i32_1 = arith.constant 0 : i32
    return %c0_i32, %c0_i32_0 : i32, i32
  }
  func.func @transform_8(%arg0: i32) -> (i32, i32) {
    %c0_i32 = arith.constant 0 : i32
    %c0_i32_0 = arith.constant 0 : i32
    return %arg0, %c0_i32 : i32, i32
  }
}

</mosaic_0001>

<llo_original>
// kernel: tpu_custom_call.1
$region0: #{tpu_custom_call.1}
  #allocation0 [shape = 'u32[]', space=smem, size = 0x4, offset = 0x4, fixed_abs, tag = 'smem constant byte address 0x4 - core index']
  #allocation1 [shape = 'u32[144,128]{1,0:T(1,128)}', space=vmem, size = 0x12000, scoped, tag = 'internal scratch']
  %s0 = inlined_call_operand.hbm [shape: f32[8,5], index: 0, kind: input, shape index: {}]
  %s1 = inlined_call_operand.hbm [shape: f32[8,5], index: 1, kind: input, shape index: {}]
  %s2 = inlined_call_operand.hbm [shape: f32[10,128], index: 2, kind: input, shape index: {}]
  %s3 = inlined_call_operand.vmem [shape: f32[1,128], index: 3, kind: input, shape index: {}]
  %s4 = inlined_call_operand.hbm [shape: f32[128,128], index: 4, kind: input, shape index: {}]
  %s5 = inlined_call_operand.vmem [shape: f32[1,128], index: 5, kind: input, shape index: {}]
  %s6 = inlined_call_operand.hbm [shape: f32[128,128], index: 6, kind: input, shape index: {}]
  %s7 = inlined_call_operand.vmem [shape: f32[1,128], index: 7, kind: input, shape index: {}]
  %s8 = inlined_call_operand.hbm [shape: f32[8,128], index: 8, kind: output, shape index: {}]
  %s9 = sld [smem:[#allocation0]]
  $region62: #{tpu_custom_call.1} parent=0
    _
  %s11 = ssub.s32 1, %s9
  %s12 = scalar_select 0, %s11, %s9
  $region1: #{tpu_custom_call.1} parent=0
    #allocation2 [shape = 'u8[4096]{0}', space=vmem, size = 0x1000, scoped, tag = 'input window, operand 0, single buffered']
    #allocation3 [shape = 's32[1]{0}', space=sflag, size = 0x4, scoped, tag = 'scoped memory for tpu_custom_call.1']
    #allocation4 [shape = 's32[1]{0}', space=sflag, size = 0x4, scoped, tag = 'scoped memory for tpu_custom_call.1']
    #allocation5 [shape = 'u8[4096]{0}', space=vmem, size = 0x1000, scoped, tag = 'input window, operand 1, single buffered']
    #allocation6 [shape = 's32[1]{0}', space=sflag, size = 0x4, scoped, tag = 'scoped memory for tpu_custom_call.1']
    #allocation7 [shape = 'u8[8192]{0}', space=vmem, size = 0x2000, scoped, tag = 'input window, operand 2, single buffered']
    #allocation8 [shape = 'u8[65536]{0}', space=vmem, size = 0x10000, scoped, tag = 'input window, operand 4, single buffered']
    #allocation9 [shape = 's32[1]{0}', space=sflag, size = 0x4, scoped, tag = 'scoped memory for tpu_custom_call.1']
    #allocation10 [shape = 'u8[65536]{0}', space=vmem, size = 0x10000, scoped, tag = 'input window, operand 6, single buffered']
    #allocation11 [shape = 'u8[4096]{0}', space=vmem, size = 0x1000, scoped, tag = 'output window, operand 0, single buffered']
    %13 = vsyncpa [#allocation3], 0
    %14 = vsyncpa [#allocation6], 0
    %15 = vsyncpa [#allocation9], 0
    %16 = vsyncpa [#allocation4], 0
    // Predicated region
    $region2: #{tpu_custom_call.1} parent=1 // pred_check
      _
    $region3: #{tpu_custom_call.1} parent=1 // pred_check_branch
      %18 = sbr.rel (0) target = $region5
    $region4: #{tpu_custom_call.1} parent=1 // pred_region
      %s20 = ssub.s32 128, 128
      %21 = vsyncadd [#allocation3], %s20
      %s23 = sshll.u32 [#allocation2], 4
      %s24 = int_to_ptr.vmem [resolvable:$true] %s23
      %26 = dma.hbm_to_vmem [thread:$0]  %s0, 128, %s24, [#allocation3]
    $region5: #{tpu_custom_call.1} parent=1 // pred_fallthru
      _
    // Predicated region
    $region6: #{tpu_custom_call.1} parent=1 // pred_check
      _
    $region7: #{tpu_custom_call.1} parent=1 // pred_check_branch
      %28 = sbr.rel (0) target = $region9
    $region8: #{tpu_custom_call.1} parent=1 // pred_region
      %s30 = ssub.s32 128, 128
      %31 = vsyncadd [#allocation6], %s30
      %s33 = sshll.u32 [#allocation5], 4
      %s34 = int_to_ptr.vmem [resolvable:$true] %s33
      %36 = dma.hbm_to_vmem [thread:$0]  %s1, 128, %s34, [#allocation6]
    $region9: #{tpu_custom_call.1} parent=1 // pred_fallthru
      _
    // Predicated region
    $region10: #{tpu_custom_call.1} parent=1 // pred_check
      _
    $region11: #{tpu_custom_call.1} parent=1 // pred_check_branch
      %38 = sbr.rel (0) target = $region13
    $region12: #{tpu_custom_call.1} parent=1 // pred_region
      %s40 = ssub.s32 256, 256
      %41 = vsyncadd [#allocation6], %s40
      %s42 = sshll.u32 [#allocation7], 4
      %s43 = int_to_ptr.vmem [resolvable:$true] %s42
      %48 = dma.hbm_to_vmem [thread:$0]  %s2, 256, %s43, [#allocation6], 128, 128, 8
    $region13: #{tpu_custom_call.1} parent=1 // pred_fallthru
      _
    // Predicated region
    $region14: #{tpu_custom_call.1} parent=1 // pred_check
      _
    $region15: #{tpu_custom_call.1} parent=1 // pred_check_branch
      %50 = sbr.rel (0) target = $region17
    $region16: #{tpu_custom_call.1} parent=1 // pred_region
      _
    $region17: #{tpu_custom_call.1} parent=1 // pred_fallthru
      _
    // Predicated region
    $region18: #{tpu_custom_call.1} parent=1 // pred_check
      _
    $region19: #{tpu_custom_call.1} parent=1 // pred_check_branch
      %52 = sbr.rel (0) target = $region21
    $region20: #{tpu_custom_call.1} parent=1 // pred_region
      %s54 = ssub.s32 2048, 2048
      %55 = vsyncadd [#allocation9], %s54
      %s56 = sshll.u32 [#allocation8], 4
      %s57 = int_to_ptr.vmem [resolvable:$true] %s56
      %62 = dma.hbm_to_vmem [thread:$0]  %s4, 2048, %s57, [#allocation9], 128, 128, 8
    $region21: #{tpu_custom_call.1} parent=1 // pred_fallthru
      _
    // Predicated region
    $region22: #{tpu_custom_call.1} parent=1 // pred_check
      _
    $region23: #{tpu_custom_call.1} parent=1 // pred_check_branch
      %64 = sbr.rel (0) target = $region25
    $region24: #{tpu_custom_call.1} parent=1 // pred_region
      _
    $region25: #{tpu_custom_call.1} parent=1 // pred_fallthru
      _
    // Predicated region
    $region26: #{tpu_custom_call.1} parent=1 // pred_check
      _
    $region27: #{tpu_custom_call.1} parent=1 // pred_check_branch
      %66 = sbr.rel (0) target = $region29
    $region28: #{tpu_custom_call.1} parent=1 // pred_region
      %s68 = ssub.s32 2048, 2048
      %69 = vsyncadd [#allocation9], %s68
      %s70 = sshll.u32 [#allocation10], 4
      %s71 = int_to_ptr.vmem [resolvable:$true] %s70
      %76 = dma.hbm_to_vmem [thread:$0]  %s6, 2048, %s71, [#allocation9], 128, 128, 8
    $region29: #{tpu_custom_call.1} parent=1 // pred_fallthru
      _
    // Predicated region
    $region30: #{tpu_custom_call.1} parent=1 // pred_check
      _
    $region31: #{tpu_custom_call.1} parent=1 // pred_check_branch
      %78 = sbr.rel (0) target = $region33
    $region32: #{tpu_custom_call.1} parent=1 // pred_region
      _
    $region33: #{tpu_custom_call.1} parent=1 // pred_fallthru
      _
    // Predicated region
    $region34: #{tpu_custom_call.1} parent=1 // pred_check
      _
    $region35: #{tpu_custom_call.1} parent=1 // pred_check_branch
      %80 = sbr.rel (0) target = $region37
    $region36: #{tpu_custom_call.1} parent=1 // pred_region
      %81 = dma.done [#allocation3], 128
    $region37: #{tpu_custom_call.1} parent=1 // pred_fallthru
      _
    // Predicated region
    $region38: #{tpu_custom_call.1} parent=1 // pred_check
      _
    $region39: #{tpu_custom_call.1} parent=1 // pred_check_branch
      %83 = sbr.rel (0) target = $region41
    $region40: #{tpu_custom_call.1} parent=1 // pred_region
      %84 = dma.done [#allocation6], 128
    $region41: #{tpu_custom_call.1} parent=1 // pred_fallthru
      _
    // Predicated region
    $region42: #{tpu_custom_call.1} parent=1 // pred_check
      _
    $region43: #{tpu_custom_call.1} parent=1 // pred_check_branch
      %86 = sbr.rel (0) target = $region45
    $region44: #{tpu_custom_call.1} parent=1 // pred_region
      %87 = dma.done [#allocation6], 256
    $region45: #{tpu_custom_call.1} parent=1 // pred_fallthru
      _
    // Predicated region
    $region46: #{tpu_custom_call.1} parent=1 // pred_check
      _
    $region47: #{tpu_custom_call.1} parent=1 // pred_check_branch
      %89 = sbr.rel (0) target = $region49
    $region48: #{tpu_custom_call.1} parent=1 // pred_region
      %90 = dma.done [#allocation9], 2048
    $region49: #{tpu_custom_call.1} parent=1 // pred_fallthru
      _
    // Predicated region
    $region50: #{tpu_custom_call.1} parent=1 // pred_check
      _
    $region51: #{tpu_custom_call.1} parent=1 // pred_check_branch
      %92 = sbr.rel (0) target = $region53
    $region52: #{tpu_custom_call.1} parent=1 // pred_region
      %93 = dma.done [#allocation9], 2048
    $region53: #{tpu_custom_call.1} parent=1 // pred_fallthru
      _
    %v94 = vld [vmem:[#allocation2] sm:$0xff]
    %v95 = vld [vmem:[#allocation5] sm:$0xff]
    %97 = vrot.lane.b32.xlu0 %v95, 5
    %v98 = vpop.permute.xlu0 %97
    %vm100 = vcmask 39936
    %v101 = vsel %vm100, %v94, %v98
    %v102 = vld [vmem:[#allocation7] sm:$0xff]
    %v103 = vld [vmem:[#allocation7 + $0x8] sm:$0x3]
    %v104 = vld [vmem:[%s3] sm:$0x1]
    %v106 = vlaneseq
    %v107 = vshrl.u32 %v106, 7
    %v108 = vsub.s32 0, %v107
    %v109 = vrot.slane %v104, %v108
    %vm111 = vcmask 80896
    %v113 = vsel %vm111, %v101, 0
    %vm115 = vcmask 1041408
    %v117 = vsel %vm115, %v103, 0
    %119 = vmatprep.subr.mxu0 0.0
    %120 = vmatpush1.msra.mxu0 %v102
    %121 = vmatprep.subr.mxu0 0.0
    %122 = vmatpush1.msra.mxu0 %v117
    %123 = vmatprep.subr.mxu0 0.0
    %124 = vmatpush1.msra.mxu0 0.0
    %125 = vmatprep.subr.mxu0 0.0
    %126 = vmatpush1.msra.mxu0 0.0
    %127 = vmatprep.subr.mxu0 0.0
    %128 = vmatpush1.msra.mxu0 0.0
    %129 = vmatprep.subr.mxu0 0.0
    %130 = vmatpush1.msra.mxu0 0.0
    %131 = vmatprep.subr.mxu0 0.0
    %132 = vmatpush1.msra.mxu0 0.0
    %133 = vmatprep.subr.mxu0 0.0
    %134 = vmatpush1.msra.mxu0 0.0
    %135 = vmatprep.subr.mxu0 0.0
    %136 = vmatpush1.msra.mxu0 0.0
    %137 = vmatprep.subr.mxu0 0.0
    %138 = vmatpush1.msra.mxu0 0.0
    %139 = vmatprep.subr.mxu0 0.0
    %140 = vmatpush1.msra.mxu0 0.0
    %141 = vmatprep.subr.mxu0 0.0
    %142 = vmatpush1.msra.mxu0 0.0
    %143 = vmatprep.subr.mxu0 0.0
    %144 = vmatpush1.msra.mxu0 0.0
    %145 = vmatprep.subr.mxu0 0.0
    %146 = vmatpush1.msra.mxu0 0.0
    %147 = vmatprep.subr.mxu0 0.0
    %148 = vmatpush1.msra.mxu0 0.0
    %149 = vmatprep.subr.mxu0 0.0
    %150 = vmatpush1.msra.mxu0 0.0
    %151 = vmatprep.subr.mxu0 0.0
    %152 = vmatpush1.msra.mxu0 0.0
    %153 = vmatprep.subr.mxu0 0.0
    %154 = vmatpush1.msra.mxu0 0.0
    %155 = vmatprep.subr.mxu0 0.0
    %156 = vmatpush1.msra.mxu0 0.0
    %157 = vmatprep.subr.mxu0 0.0
    %158 = vmatpush1.msra.mxu0 0.0
    %159 = vmatprep.subr.mxu0 0.0
    %160 = vmatpush1.msra.mxu0 0.0
    %161 = vmatprep.subr.mxu0 0.0
    %162 = vmatpush1.msra.mxu0 0.0
    %163 = vmatprep.subr.mxu0 0.0
    %164 = vmatpush1.msra.mxu0 0.0
    %165 = vmatprep.subr.mxu0 0.0
    %166 = vmatpush1.msra.mxu0 0.0
    %167 = vmatprep.subr.mxu0 0.0
    %168 = vmatpush1.msra.mxu0 0.0
    %169 = vmatprep.subr.mxu0 0.0
    %170 = vmatpush1.msra.mxu0 0.0
    %171 = vmatprep.subr.mxu0 0.0
    %172 = vmatpush1.msra.mxu0 0.0
    %173 = vmatprep.subr.mxu0 0.0
    %174 = vmatpush1.msra.mxu0 0.0
    %175 = vmatprep.subr.mxu0 0.0
    %176 = vmatpush1.msra.mxu0 0.0
    %177 = vmatprep.subr.mxu0 0.0
    %178 = vmatpush1.msra.mxu0 0.0
    %179 = vmatprep.subr.mxu0 0.0
    %180 = vmatpush1.msra.mxu0 0.0
    %181 = vmatprep.subr.mxu0 0.0
    %182 = vmatpush1.msra.mxu0 0.0
    %183 = vmatprep.mubr.f32.mxu0 0.0
    %184 = vmatmul.mubr.f32.gmra.mrb[0].mxu0 %v113
    %v185 = vpop.f32.mrb[0].mxu0
    %v186 = vadd.f32 %v109, %v185
    %v187 = vpop.f32.mrb[0].mxu0
    %188 = vdwg.mxu0
    %v189 = vmax.f32 %v186, 0.0
    %v190 = vld [vmem:[#allocation8] sm:$0xff]
    %v191 = vld [vmem:[#allocation8 + $0x8] sm:$0xff]
    %v192 = vld [vmem:[#allocation8 + $0x10] sm:$0xff]
    %v193 = vld [vmem:[#allocation8 + $0x18] sm:$0xff]
    %v194 = vld [vmem:[#allocation8 + $0x20] sm:$0xff]
    %v195 = vld [vmem:[#allocation8 + $0x28] sm:$0xff]
    %v196 = vld [vmem:[#allocation8 + $0x30] sm:$0xff]
    %v197 = vld [vmem:[#allocation8 + $0x38] sm:$0xff]
    %v198 = vld [vmem:[#allocation8 + $0x40] sm:$0xff]
    %v199 = vld [vmem:[#allocation8 + $0x48] sm:$0xff]
    %v200 = vld [vmem:[#allocation8 + $0x50] sm:$0xff]
    %v201 = vld [vmem:[#allocation8 + $0x58] sm:$0xff]
    %v202 = vld [vmem:[#allocation8 + $0x60] sm:$0xff]
    %v203 = vld [vmem:[#allocation8 + $0x68] sm:$0xff]
    %v204 = vld [vmem:[#allocation8 + $0x70] sm:$0xff]
    %v205 = vld [vmem:[#allocation8 + $0x78] sm:$0xff]
    %v206 = vld [vmem:[%s5] sm:$0x1]
    %v208 = vlaneseq
    %v209 = vshrl.u32 %v208, 7
    %v210 = vsub.s32 0, %v209
    %v211 = vrot.slane %v206, %v210
    %213 = vmatprep.subr.mxu0 0.0
    %214 = vmatpush1.msra.mxu0 %v190
    %215 = vmatprep.subr.mxu0 0.0
    %216 = vmatpush1.msra.mxu0 %v191
    %217 = vmatprep.subr.mxu0 0.0
    %218 = vmatpush1.msra.mxu0 %v192
    %219 = vmatprep.subr.mxu0 0.0
    %220 = vmatpush1.msra.mxu0 %v193
    %221 = vmatprep.subr.mxu0 0.0
    %222 = vmatpush1.msra.mxu0 %v194
    %223 = vmatprep.subr.mxu0 0.0
    %224 = vmatpush1.msra.mxu0 %v195
    %225 = vmatprep.subr.mxu0 0.0
    %226 = vmatpush1.msra.mxu0 %v196
    %227 = vmatprep.subr.mxu0 0.0
    %228 = vmatpush1.msra.mxu0 %v197
    %229 = vmatprep.subr.mxu0 0.0
    %230 = vmatpush1.msra.mxu0 %v198
    %231 = vmatprep.subr.mxu0 0.0
    %232 = vmatpush1.msra.mxu0 %v199
    %233 = vmatprep.subr.mxu0 0.0
    %234 = vmatpush1.msra.mxu0 %v200
    %235 = vmatprep.subr.mxu0 0.0
    %236 = vmatpush1.msra.mxu0 %v201
    %237 = vmatprep.subr.mxu0 0.0
    %238 = vmatpush1.msra.mxu0 %v202
    %239 = vmatprep.subr.mxu0 0.0
    %240 = vmatpush1.msra.mxu0 %v203
    %241 = vmatprep.subr.mxu0 0.0
    %242 = vmatpush1.msra.mxu0 %v204
    %243 = vmatprep.subr.mxu0 0.0
    %244 = vmatpush1.msra.mxu0 %v205
    %245 = vmatprep.subr.mxu0 0.0
    %246 = vmatpush1.msra.mxu0 0.0
    %247 = vmatprep.subr.mxu0 0.0
    %248 = vmatpush1.msra.mxu0 0.0
    %249 = vmatprep.subr.mxu0 0.0
    %250 = vmatpush1.msra.mxu0 0.0
    %251 = vmatprep.subr.mxu0 0.0
    %252 = vmatpush1.msra.mxu0 0.0
    %253 = vmatprep.subr.mxu0 0.0
    %254 = vmatpush1.msra.mxu0 0.0
    %255 = vmatprep.subr.mxu0 0.0
    %256 = vmatpush1.msra.mxu0 0.0
    %257 = vmatprep.subr.mxu0 0.0
    %258 = vmatpush1.msra.mxu0 0.0
    %259 = vmatprep.subr.mxu0 0.0
    %260 = vmatpush1.msra.mxu0 0.0
    %261 = vmatprep.subr.mxu0 0.0
    %262 = vmatpush1.msra.mxu0 0.0
    %263 = vmatprep.subr.mxu0 0.0
    %264 = vmatpush1.msra.mxu0 0.0
    %265 = vmatprep.subr.mxu0 0.0
    %266 = vmatpush1.msra.mxu0 0.0
    %267 = vmatprep.subr.mxu0 0.0
    %268 = vmatpush1.msra.mxu0 0.0
    %269 = vmatprep.subr.mxu0 0.0
    %270 = vmatpush1.msra.mxu0 0.0
    %271 = vmatprep.subr.mxu0 0.0
    %272 = vmatpush1.msra.mxu0 0.0
    %273 = vmatprep.subr.mxu0 0.0
    %274 = vmatpush1.msra.mxu0 0.0
    %275 = vmatprep.subr.mxu0 0.0
    %276 = vmatpush1.msra.mxu0 0.0
    %277 = vmatprep.mubr.f32.mxu0 0.0
    %278 = vmatmul.mubr.f32.gmra.mrb[0].mxu0 %v189
    %v279 = vpop.f32.mrb[0].mxu0
    %v280 = vadd.f32 %v211, %v279
    %v281 = vpop.f32.mrb[0].mxu0
    %282 = vdwg.mxu0
    %v283 = vmax.f32 %v280, 0.0
    %v284 = vld [vmem:[#allocation10] sm:$0xff]
    %v285 = vld [vmem:[#allocation10 + $0x8] sm:$0xff]
    %v286 = vld [vmem:[#allocation10 + $0x10] sm:$0xff]
    %v287 = vld [vmem:[#allocation10 + $0x18] sm:$0xff]
    %v288 = vld [vmem:[#allocation10 + $0x20] sm:$0xff]
    %v289 = vld [vmem:[#allocation10 + $0x28] sm:$0xff]
    %v290 = vld [vmem:[#allocation10 + $0x30] sm:$0xff]
    %v291 = vld [vmem:[#allocation10 + $0x38] sm:$0xff]
    %v292 = vld [vmem:[#allocation10 + $0x40] sm:$0xff]
    %v293 = vld [vmem:[#allocation10 + $0x48] sm:$0xff]
    %v294 = vld [vmem:[#allocation10 + $0x50] sm:$0xff]
    %v295 = vld [vmem:[#allocation10 + $0x58] sm:$0xff]
    %v296 = vld [vmem:[#allocation10 + $0x60] sm:$0xff]
    %v297 = vld [vmem:[#allocation10 + $0x68] sm:$0xff]
    %v298 = vld [vmem:[#allocation10 + $0x70] sm:$0xff]
    %v299 = vld [vmem:[#allocation10 + $0x78] sm:$0xff]
    %v300 = vld [vmem:[%s7] sm:$0x1]
    %v302 = vlaneseq
    %v303 = vshrl.u32 %v302, 7
    %v304 = vsub.s32 0, %v303
    %v305 = vrot.slane %v300, %v304
    %307 = vmatprep.subr.mxu0 0.0
    %308 = vmatpush1.msra.mxu0 %v284
    %309 = vmatprep.subr.mxu0 0.0
    %310 = vmatpush1.msra.mxu0 %v285
    %311 = vmatprep.subr.mxu0 0.0
    %312 = vmatpush1.msra.mxu0 %v286
    %313 = vmatprep.subr.mxu0 0.0
    %314 = vmatpush1.msra.mxu0 %v287
    %315 = vmatprep.subr.mxu0 0.0
    %316 = vmatpush1.msra.mxu0 %v288
    %317 = vmatprep.subr.mxu0 0.0
    %318 = vmatpush1.msra.mxu0 %v289
    %319 = vmatprep.subr.mxu0 0.0
    %320 = vmatpush1.msra.mxu0 %v290
    %321 = vmatprep.subr.mxu0 0.0
    %322 = vmatpush1.msra.mxu0 %v291
    %323 = vmatprep.subr.mxu0 0.0
    %324 = vmatpush1.msra.mxu0 %v292
    %325 = vmatprep.subr.mxu0 0.0
    %326 = vmatpush1.msra.mxu0 %v293
    %327 = vmatprep.subr.mxu0 0.0
    %328 = vmatpush1.msra.mxu0 %v294
    %329 = vmatprep.subr.mxu0 0.0
    %330 = vmatpush1.msra.mxu0 %v295
    %331 = vmatprep.subr.mxu0 0.0
    %332 = vmatpush1.msra.mxu0 %v296
    %333 = vmatprep.subr.mxu0 0.0
    %334 = vmatpush1.msra.mxu0 %v297
    %335 = vmatprep.subr.mxu0 0.0
    %336 = vmatpush1.msra.mxu0 %v298
    %337 = vmatprep.subr.mxu0 0.0
    %338 = vmatpush1.msra.mxu0 %v299
    %339 = vmatprep.subr.mxu0 0.0
    %340 = vmatpush1.msra.mxu0 0.0
    %341 = vmatprep.subr.mxu0 0.0
    %342 = vmatpush1.msra.mxu0 0.0
    %343 = vmatprep.subr.mxu0 0.0
    %344 = vmatpush1.msra.mxu0 0.0
    %345 = vmatprep.subr.mxu0 0.0
    %346 = vmatpush1.msra.mxu0 0.0
    %347 = vmatprep.subr.mxu0 0.0
    %348 = vmatpush1.msra.mxu0 0.0
    %349 = vmatprep.subr.mxu0 0.0
    %350 = vmatpush1.msra.mxu0 0.0
    %351 = vmatprep.subr.mxu0 0.0
    %352 = vmatpush1.msra.mxu0 0.0
    %353 = vmatprep.subr.mxu0 0.0
    %354 = vmatpush1.msra.mxu0 0.0
    %355 = vmatprep.subr.mxu0 0.0
    %356 = vmatpush1.msra.mxu0 0.0
    %357 = vmatprep.subr.mxu0 0.0
    %358 = vmatpush1.msra.mxu0 0.0
    %359 = vmatprep.subr.mxu0 0.0
    %360 = vmatpush1.msra.mxu0 0.0
    %361 = vmatprep.subr.mxu0 0.0
    %362 = vmatpush1.msra.mxu0 0.0
    %363 = vmatprep.subr.mxu0 0.0
    %364 = vmatpush1.msra.mxu0 0.0
    %365 = vmatprep.subr.mxu0 0.0
    %366 = vmatpush1.msra.mxu0 0.0
    %367 = vmatprep.subr.mxu0 0.0
    %368 = vmatpush1.msra.mxu0 0.0
    %369 = vmatprep.subr.mxu0 0.0
    %370 = vmatpush1.msra.mxu0 0.0
    %371 = vmatprep.mubr.f32.mxu0 0.0
    %372 = vmatmul.mubr.f32.gmra.mrb[0].mxu0 %v283
    %v373 = vpop.f32.mrb[0].mxu0
    %v374 = vadd.f32 %v305, %v373
    %v375 = vpop.f32.mrb[0].mxu0
    %376 = vdwg.mxu0
    %377 = vst [vmem:[#allocation11] sm:$0xff] %v374
    // Predicated region
    $region54: #{tpu_custom_call.1} parent=1 // pred_check
      _
    $region55: #{tpu_custom_call.1} parent=1 // pred_check_branch
      %379 = sbr.rel (0) target = $region57
    $region56: #{tpu_custom_call.1} parent=1 // pred_region
      %s381 = ssub.s32 128, 128
      %382 = vsyncadd [#allocation4], %s381
      %s384 = sshll.u32 [#allocation11], 4
      %s385 = int_to_ptr.vmem [resolvable:$true] %s384
      %387 = dma.vmem_to_hbm [thread:$0]  %s385, 128, %s8, [#allocation4]
    $region57: #{tpu_custom_call.1} parent=1 // pred_fallthru
      _
    // Predicated region
    $region58: #{tpu_custom_call.1} parent=1 // pred_check
      _
    $region59: #{tpu_custom_call.1} parent=1 // pred_check_branch
      %389 = sbr.rel (0) target = $region61
    $region60: #{tpu_custom_call.1} parent=1 // pred_region
      %390 = dma.done [#allocation4], 128
    $region61: #{tpu_custom_call.1} parent=1 // pred_fallthru
      _
    %391 = vsyncpa [#allocation3], 1
    %392 = vsyncpa [#allocation6], 1
    %393 = vsyncpa [#allocation9], 1
    %394 = vsyncpa [#allocation4], 1

</llo_original>
